<compile_context>
chip_gen: v7x
topology: tpu7x:2x2x1
jax: 0.10.0
libtpu: 0.0.40
codegen_flags: <defaults>
</compile_context>

<pallas_src>
import functools

import jax
import jax.numpy as jnp
from jax.experimental import pallas as pl
from jax.experimental.pallas import tpu as pltpu


# ----------------------------- Pallas kernel --------------------------------

def _layernorm_no_affine(x, eps=1e-8):
    # nn.LayerNorm(d, elementwise_affine=False, eps=1e-8): biased variance.
    mu = jnp.mean(x, axis=-1, keepdims=True)
    var = jnp.mean((x - mu) ** 2, axis=-1, keepdims=True)
    return (x - mu) * jax.lax.rsqrt(var + eps)


def deepfm_kernel(num_fields, emb_size,
                  flat_ref, lin_ref,
                  w1_ref, b1_ref, w2_ref, b2_ref, w3_ref, b3_ref,
                  out_ref):
    flat = flat_ref[...]                                     # (TB, F*E) f32

    # ---- FM second-order interaction (FMLayer), kept in f32 ----
    # fm = 0.5 * ( sum_e (sum_f x_fe)^2  -  sum_{f,e} x_fe^2 )
    s = flat[:, 0:emb_size]
    for f in range(1, num_fields):                           # static unroll
        s = s + flat[:, f * emb_size:(f + 1) * emb_size]
    sq_sum = jnp.sum(flat * flat, axis=1, keepdims=True)     # full-width VPU + reduce
    fm_out = 0.5 * (jnp.sum(s * s, axis=1, keepdims=True) - sq_sum)   # (TB, 1)

    # ---- first-order linear term (Linear module, bias folded into b3) ----
    lin_out = jnp.sum(lin_ref[...], axis=1, keepdims=True)             # (TB, 1)

    # ---- deep MLP (Dropout = identity in eval mode) ----
    # bf16 MXU operands, f32 accumulation; elementwise math stays f32.
    h = jnp.dot(flat.astype(jnp.bfloat16), w1_ref[...],
                preferred_element_type=jnp.float32) + b1_ref[...]
    h = jnp.maximum(h, 0.0)
    h = _layernorm_no_affine(h)                                        # (TB, 128)
    h = jnp.dot(h.astype(jnp.bfloat16), w2_ref[...],
                preferred_element_type=jnp.float32) + b2_ref[...]
    h = jnp.maximum(h, 0.0)
    h = _layernorm_no_affine(h)                                        # (TB, 64)
    # N=1 matmul -> VPU multiply + lane reduce (skip MXU push/pop latency).
    dnn_out = jnp.sum(h * w3_ref[...], axis=1, keepdims=True) + b3_ref[...]  # (TB, 1)

    logits = dnn_out + fm_out + lin_out
    out_ref[...] = 1.0 / (1.0 + jnp.exp(-logits))


# ------------------------------ JAX wrapper ----------------------------------

def _round_up(x, m):
    return ((x + m - 1) // m) * m


def deepfm_forward(x_user, x_item, x_context, user_hist, hist_len, params,
                   *, block_b=4096, stream_vmem_budget=6 * 1024 * 1024):
    # user_hist / hist_len are accepted (as in the PyTorch signature) but
    # unused by DeepFM.forward.
    del user_hist, hist_len
    X = jnp.concatenate([x_user, x_item, x_context], axis=1)          # (B, F) int32
    B, F = X.shape
    E = params["w_emb"].shape[1]

    x_emb = jnp.take(params["w_emb"], X, axis=0)                      # (B, F, E)
    lin_emb = jnp.take(params["lin_emb"], X, axis=0)[..., 0]          # (B, F)
    flat = x_emb.reshape(B, F * E).astype(jnp.float32)
    lin_emb = lin_emb.astype(jnp.float32)

    # ---- batch tiling: pick the biggest TB that fits the streaming budget ----
    # Per-row streamed bytes (f32): flat + lin + out; double-buffered by Pallas.
    row_bytes = (F * E + F + 1) * 4
    tb_cap = max(8, (stream_vmem_budget // (2 * row_bytes)) // 8 * 8)
    TB = int(min(block_b, tb_cap, _round_up(B, 8)))                   # multiple of 8
    Bp = _round_up(B, TB)
    if Bp != B:
        flat = jnp.pad(flat, ((0, Bp - B), (0, 0)))
        lin_emb = jnp.pad(lin_emb, ((0, Bp - B), (0, 0)))
    grid = (Bp // TB,)

    # fold the Linear module's bias into the final MLP bias (both add scalars)
    b3_eff = (params["b3"] + params["lin_bias"]).reshape(1, 1).astype(jnp.float32)

    # MXU operands as bf16 (halves resident weight bytes; f32 accumulation in-kernel).
    w1 = params["w1"].astype(jnp.bfloat16)                            # (F*E, 128)
    w2 = params["w2"].astype(jnp.bfloat16)                            # (128, 64)
    b1 = params["b1"].reshape(1, -1).astype(jnp.float32)              # (1, 128)
    b2 = params["b2"].reshape(1, -1).astype(jnp.float32)              # (1, 64)
    w3 = params["w3"].reshape(1, -1).astype(jnp.float32)              # (1, 64) row

    kernel = functools.partial(deepfm_kernel, F, E)
    out = pl.pallas_call(
        kernel,
        out_shape=jax.ShapeDtypeStruct((Bp, 1), jnp.float32),
        grid=grid,
        in_specs=[
            pl.BlockSpec((TB, F * E), lambda i: (i, 0)),    # flat: tiled on batch
            pl.BlockSpec((TB, F), lambda i: (i, 0)),        # lin:  tiled on batch
            pl.BlockSpec(w1.shape, lambda i: (0, 0)),       # weights: VMEM-resident
            pl.BlockSpec(b1.shape, lambda i: (0, 0)),
            pl.BlockSpec(w2.shape, lambda i: (0, 0)),
            pl.BlockSpec(b2.shape, lambda i: (0, 0)),
            pl.BlockSpec(w3.shape, lambda i: (0, 0)),
            pl.BlockSpec(b3_eff.shape, lambda i: (0, 0)),
        ],
        out_specs=pl.BlockSpec((TB, 1), lambda i: (i, 0)),
        compiler_params=pltpu.CompilerParams(
            dimension_semantics=("parallel",),              # megacore split on v7x
            vmem_limit_bytes=32 * 1024 * 1024,              # safe on v5e/v6e/v7x
        ),
    )(flat, lin_emb, w1, b1, w2, b2, w3, b3_eff)
    return out[:B, 0]                                                  # (B,)


# ------------------------- deterministic params -------------------------------

def init_params(key, num_feat, num_fields, embedding_size):
    ks = jax.random.split(key, 8)

    def xavier(k, shape):
        fan_in, fan_out = shape[0], shape[1]
        bound = (6.0 / (fan_in + fan_out)) ** 0.5
        return jax.random.uniform(k, shape, jnp.float32, -bound, bound)

    d_in = num_fields * embedding_size
    return {
        # NOTE: PyTorch applies xavier_uniform_ AFTER construction, which
        # overwrites the zeroed padding_idx row, so no zeroing is done here.
        "w_emb": xavier(ks[0], (num_feat + 1, embedding_size)),
        "lin_emb": xavier(ks[1], (num_feat + 1, 1)),
        "lin_bias": jnp.zeros((1,), jnp.float32),
        "w1": xavier(ks[2], (d_in, 128)),
        "b1": jax.random.uniform(ks[3], (128,), jnp.float32, -0.05, 0.05),
        "w2": xavier(ks[4], (128, 64)),
        "b2": jax.random.uniform(ks[5], (64,), jnp.float32, -0.05, 0.05),
        "w3": xavier(ks[6], (64, 1)),
        "b3": jax.random.uniform(ks[7], (1,), jnp.float32, -0.05, 0.05),
    }


# ---------------------------------- main --------------------------------------

if __name__ == "__main__":
    B = 8
    NUM_FEAT = 100
    EMB = 8
    F_USER, F_ITEM, F_CTX = 2, 2, 2
    NUM_FIELDS = F_USER + F_ITEM + F_CTX

    key = jax.random.PRNGKey(0)
    k_p, k_u, k_i, k_c = jax.random.split(key, 4)
    params = init_params(k_p, NUM_FEAT, NUM_FIELDS, EMB)

    x_user = jax.random.randint(k_u, (B, F_USER), 1, NUM_FEAT + 1, dtype=jnp.int32)
    x_item = jax.random.randint(k_i, (B, F_ITEM), 1, NUM_FEAT + 1, dtype=jnp.int32)
    x_context = jax.random.randint(k_c, (B, F_CTX), 1, NUM_FEAT + 1, dtype=jnp.int32)
    user_hist = jnp.zeros((B, 4), jnp.int32)   # unused by forward
    hist_len = jnp.zeros((B,), jnp.int32)      # unused by forward

    out = deepfm_forward(x_user, x_item, x_context, user_hist, hist_len, params)
    out = jax.block_until_ready(out)
    assert out.shape == (B,)
    assert bool(jnp.all(jnp.isfinite(out)))
    print("KERNEL_OK")
</pallas_src>

<mosaic_0001>
module attributes {stable_mosaic.version = 11 : i64} {
  func.func @deepfm_kernel(%arg0: i32, %arg1: memref<8x48xf32, #tpu.memory_space<vmem>>, %arg2: memref<8x6xf32, #tpu.memory_space<vmem>>, %arg3: memref<48x128xbf16, #tpu.memory_space<vmem>>, %arg4: memref<1x128xf32, #tpu.memory_space<vmem>>, %arg5: memref<128x64xbf16, #tpu.memory_space<vmem>>, %arg6: memref<1x64xf32, #tpu.memory_space<vmem>>, %arg7: memref<1x64xf32, #tpu.memory_space<vmem>>, %arg8: memref<1x1xf32, #tpu.memory_space<vmem>>, %arg9: memref<8x1xf32, #tpu.memory_space<vmem>>) attributes {dimension_semantics = [#tpu.dimension_semantics<parallel>], iteration_bounds = array<i64: 1>, scalar_prefetch = 0 : i64, scratch_operands = 0 : i64, tpu.core_type = #tpu.core_type<tc>, window_params = [{transform_indices = @transform_0, window_bounds = array<i64: 8, 48>}, {transform_indices = @transform_1, window_bounds = array<i64: 8, 6>}, {pipeline_mode = #tpu.pipeline_mode<synchronous>, transform_indices = @transform_2, window_bounds = array<i64: 48, 128>}, {pipeline_mode = #tpu.pipeline_mode<synchronous>, transform_indices = @transform_3, window_bounds = array<i64: 1, 128>}, {pipeline_mode = #tpu.pipeline_mode<synchronous>, transform_indices = @transform_4, window_bounds = array<i64: 128, 64>}, {pipeline_mode = #tpu.pipeline_mode<synchronous>, transform_indices = @transform_5, window_bounds = array<i64: 1, 64>}, {pipeline_mode = #tpu.pipeline_mode<synchronous>, transform_indices = @transform_6, window_bounds = array<i64: 1, 64>}, {pipeline_mode = #tpu.pipeline_mode<synchronous>, transform_indices = @transform_7, window_bounds = array<i64: 1, 1>}, {transform_indices = @transform_8, window_bounds = array<i64: 8, 1>}]} {
    %c0 = arith.constant 0 : index
    %c0_0 = arith.constant 0 : index
    %0 = vector.load %arg1[%c0, %c0_0] : memref<8x48xf32, #tpu.memory_space<vmem>>, vector<8x48xf32>
    %1 = vector.extract_strided_slice %0 {offsets = [0, 0], sizes = [8, 8], strides = [1, 1]} : vector<8x48xf32> to vector<8x8xf32>
    %2 = vector.extract_strided_slice %0 {offsets = [0, 8], sizes = [8, 8], strides = [1, 1]} : vector<8x48xf32> to vector<8x8xf32>
    %3 = arith.addf %1, %2 : vector<8x8xf32>
    %4 = vector.extract_strided_slice %0 {offsets = [0, 16], sizes = [8, 8], strides = [1, 1]} : vector<8x48xf32> to vector<8x8xf32>
    %5 = arith.addf %3, %4 : vector<8x8xf32>
    %6 = vector.extract_strided_slice %0 {offsets = [0, 24], sizes = [8, 8], strides = [1, 1]} : vector<8x48xf32> to vector<8x8xf32>
    %7 = arith.addf %5, %6 : vector<8x8xf32>
    %8 = vector.extract_strided_slice %0 {offsets = [0, 32], sizes = [8, 8], strides = [1, 1]} : vector<8x48xf32> to vector<8x8xf32>
    %9 = arith.addf %7, %8 : vector<8x8xf32>
    %10 = vector.extract_strided_slice %0 {offsets = [0, 40], sizes = [8, 8], strides = [1, 1]} : vector<8x48xf32> to vector<8x8xf32>
    %11 = arith.addf %9, %10 : vector<8x8xf32>
    %12 = arith.mulf %0, %0 : vector<8x48xf32>
    %cst = arith.constant dense<0.000000e+00> : vector<8xf32>
    %13 = vector.multi_reduction <add>, %12, %cst [1] : vector<8x48xf32> to vector<8xf32>
    %14 = vector.shape_cast %13 : vector<8xf32> to vector<8x1xf32>
    %15 = arith.mulf %11, %11 : vector<8x8xf32>
    %cst_1 = arith.constant dense<0.000000e+00> : vector<8xf32>
    %16 = vector.multi_reduction <add>, %15, %cst_1 [1] : vector<8x8xf32> to vector<8xf32>
    %17 = vector.shape_cast %16 : vector<8xf32> to vector<8x1xf32>
    %18 = arith.subf %17, %14 : vector<8x1xf32>
    %cst_2 = arith.constant 5.000000e-01 : f32
    %19 = vector.broadcast %cst_2 : f32 to vector<8x1xf32>
    %20 = arith.mulf %19, %18 : vector<8x1xf32>
    %c0_3 = arith.constant 0 : index
    %c0_4 = arith.constant 0 : index
    %21 = vector.load %arg2[%c0_3, %c0_4] : memref<8x6xf32, #tpu.memory_space<vmem>>, vector<8x6xf32>
    %cst_5 = arith.constant dense<0.000000e+00> : vector<8xf32>
    %22 = vector.multi_reduction <add>, %21, %cst_5 [1] : vector<8x6xf32> to vector<8xf32>
    %23 = vector.shape_cast %22 : vector<8xf32> to vector<8x1xf32>
    %24 = arith.truncf %0 : vector<8x48xf32> to vector<8x48xbf16>
    %c0_6 = arith.constant 0 : index
    %c0_7 = arith.constant 0 : index
    %25 = vector.load %arg3[%c0_6, %c0_7] : memref<48x128xbf16, #tpu.memory_space<vmem>>, vector<48x128xbf16>
    %cst_8 = arith.constant dense<0.000000e+00> : vector<8x128xf32>
    %26 = tpu.matmul %24, %25, %cst_8 {dimension_numbers = #tpu.dot_dimension_numbers<[1], [0], [0], [1], [0, 0, 1, 1], [], []>} : vector<8x48xbf16>, vector<48x128xbf16>, vector<8x128xf32> -> vector<8x128xf32>
    %c0_9 = arith.constant 0 : index
    %c0_10 = arith.constant 0 : index
    %27 = vector.load %arg4[%c0_9, %c0_10] : memref<1x128xf32, #tpu.memory_space<vmem>>, vector<1x128xf32>
    %28 = vector.broadcast %27 : vector<1x128xf32> to vector<8x128xf32>
    %29 = arith.addf %26, %28 : vector<8x128xf32>
    %cst_11 = arith.constant 0.000000e+00 : f32
    %30 = vector.broadcast %cst_11 : f32 to vector<8x128xf32>
    %31 = arith.maximumf %29, %30 : vector<8x128xf32>
    %cst_12 = arith.constant dense<0.000000e+00> : vector<8xf32>
    %32 = vector.multi_reduction <add>, %31, %cst_12 [1] : vector<8x128xf32> to vector<8xf32>
    %33 = vector.shape_cast %32 : vector<8xf32> to vector<8x1xf32>
    %cst_13 = arith.constant 1.280000e+02 : f32
    %34 = vector.broadcast %cst_13 : f32 to vector<8x1xf32>
    %35 = arith.divf %33, %34 : vector<8x1xf32>
    %36 = vector.broadcast %35 : vector<8x1xf32> to vector<8x128xf32>
    %37 = arith.subf %31, %36 : vector<8x128xf32>
    %38 = arith.mulf %37, %37 : vector<8x128xf32>
    %cst_14 = arith.constant dense<0.000000e+00> : vector<8xf32>
    %39 = vector.multi_reduction <add>, %38, %cst_14 [1] : vector<8x128xf32> to vector<8xf32>
    %40 = vector.shape_cast %39 : vector<8xf32> to vector<8x1xf32>
    %cst_15 = arith.constant 1.280000e+02 : f32
    %41 = vector.broadcast %cst_15 : f32 to vector<8x1xf32>
    %42 = arith.divf %40, %41 : vector<8x1xf32>
    %43 = vector.broadcast %35 : vector<8x1xf32> to vector<8x128xf32>
    %44 = arith.subf %31, %43 : vector<8x128xf32>
    %cst_16 = arith.constant 9.99999993E-9 : f32
    %45 = vector.broadcast %cst_16 : f32 to vector<8x1xf32>
    %46 = arith.addf %42, %45 : vector<8x1xf32>
    %47 = math.rsqrt %46 : vector<8x1xf32>
    %48 = vector.broadcast %47 : vector<8x1xf32> to vector<8x128xf32>
    %49 = arith.mulf %44, %48 : vector<8x128xf32>
    %50 = arith.truncf %49 : vector<8x128xf32> to vector<8x128xbf16>
    %c0_17 = arith.constant 0 : index
    %c0_18 = arith.constant 0 : index
    %51 = vector.load %arg5[%c0_17, %c0_18] : memref<128x64xbf16, #tpu.memory_space<vmem>>, vector<128x64xbf16>
    %cst_19 = arith.constant dense<0.000000e+00> : vector<8x64xf32>
    %52 = tpu.matmul %50, %51, %cst_19 {dimension_numbers = #tpu.dot_dimension_numbers<[1], [0], [0], [1], [0, 0, 1, 1], [], []>} : vector<8x128xbf16>, vector<128x64xbf16>, vector<8x64xf32> -> vector<8x64xf32>
    %c0_20 = arith.constant 0 : index
    %c0_21 = arith.constant 0 : index
    %53 = vector.load %arg6[%c0_20, %c0_21] : memref<1x64xf32, #tpu.memory_space<vmem>>, vector<1x64xf32>
    %54 = vector.broadcast %53 : vector<1x64xf32> to vector<8x64xf32>
    %55 = arith.addf %52, %54 : vector<8x64xf32>
    %cst_22 = arith.constant 0.000000e+00 : f32
    %56 = vector.broadcast %cst_22 : f32 to vector<8x64xf32>
    %57 = arith.maximumf %55, %56 : vector<8x64xf32>
    %cst_23 = arith.constant dense<0.000000e+00> : vector<8xf32>
    %58 = vector.multi_reduction <add>, %57, %cst_23 [1] : vector<8x64xf32> to vector<8xf32>
    %59 = vector.shape_cast %58 : vector<8xf32> to vector<8x1xf32>
    %cst_24 = arith.constant 6.400000e+01 : f32
    %60 = vector.broadcast %cst_24 : f32 to vector<8x1xf32>
    %61 = arith.divf %59, %60 : vector<8x1xf32>
    %62 = vector.broadcast %61 : vector<8x1xf32> to vector<8x64xf32>
    %63 = arith.subf %57, %62 : vector<8x64xf32>
    %64 = arith.mulf %63, %63 : vector<8x64xf32>
    %cst_25 = arith.constant dense<0.000000e+00> : vector<8xf32>
    %65 = vector.multi_reduction <add>, %64, %cst_25 [1] : vector<8x64xf32> to vector<8xf32>
    %66 = vector.shape_cast %65 : vector<8xf32> to vector<8x1xf32>
    %cst_26 = arith.constant 6.400000e+01 : f32
    %67 = vector.broadcast %cst_26 : f32 to vector<8x1xf32>
    %68 = arith.divf %66, %67 : vector<8x1xf32>
    %69 = vector.broadcast %61 : vector<8x1xf32> to vector<8x64xf32>
    %70 = arith.subf %57, %69 : vector<8x64xf32>
    %cst_27 = arith.constant 9.99999993E-9 : f32
    %71 = vector.broadcast %cst_27 : f32 to vector<8x1xf32>
    %72 = arith.addf %68, %71 : vector<8x1xf32>
    %73 = math.rsqrt %72 : vector<8x1xf32>
    %74 = vector.broadcast %73 : vector<8x1xf32> to vector<8x64xf32>
    %75 = arith.mulf %70, %74 : vector<8x64xf32>
    %c0_28 = arith.constant 0 : index
    %c0_29 = arith.constant 0 : index
    %76 = vector.load %arg7[%c0_28, %c0_29] : memref<1x64xf32, #tpu.memory_space<vmem>>, vector<1x64xf32>
    %77 = vector.broadcast %76 : vector<1x64xf32> to vector<8x64xf32>
    %78 = arith.mulf %75, %77 : vector<8x64xf32>
    %cst_30 = arith.constant dense<0.000000e+00> : vector<8xf32>
    %79 = vector.multi_reduction <add>, %78, %cst_30 [1] : vector<8x64xf32> to vector<8xf32>
    %80 = vector.shape_cast %79 : vector<8xf32> to vector<8x1xf32>
    %c0_31 = arith.constant 0 : index
    %c0_32 = arith.constant 0 : index
    %81 = vector.load %arg8[%c0_31, %c0_32] : memref<1x1xf32, #tpu.memory_space<vmem>>, vector<1x1xf32>
    %82 = vector.broadcast %81 : vector<1x1xf32> to vector<8x1xf32>
    %83 = arith.addf %80, %82 : vector<8x1xf32>
    %84 = arith.addf %83, %20 : vector<8x1xf32>
    %85 = arith.addf %84, %23 : vector<8x1xf32>
    %cst_33 = arith.constant 0.000000e+00 : f32
    %86 = vector.broadcast %cst_33 : f32 to vector<8x1xf32>
    %87 = arith.subf %86, %85 : vector<8x1xf32>
    %88 = math.exp %87 : vector<8x1xf32>
    %cst_34 = arith.constant 1.000000e+00 : f32
    %89 = vector.broadcast %cst_34 : f32 to vector<8x1xf32>
    %90 = arith.addf %89, %88 : vector<8x1xf32>
    %cst_35 = arith.constant 1.000000e+00 : f32
    %91 = vector.broadcast %cst_35 : f32 to vector<8x1xf32>
    %92 = arith.divf %91, %90 : vector<8x1xf32>
    %c0_36 = arith.constant 0 : index
    %c0_37 = arith.constant 0 : index
    %93 = vector.load %arg9[%c0_36, %c0_37] : memref<8x1xf32, #tpu.memory_space<vmem>>, vector<8x1xf32>
    tpu.vector_store %arg9[%c0_36, %c0_37], %92 {strides = array<i32>} : memref<8x1xf32, #tpu.memory_space<vmem>>, vector<8x1xf32>,
    return
  }
  func.func @transform_0(%arg0: i32) -> (i32, i32) {
    %c0_i32 = arith.constant 0 : i32
    %c0_i32_0 = arith.constant 0 : i32
    return %arg0, %c0_i32 : i32, i32
  }
  func.func @transform_1(%arg0: i32) -> (i32, i32) {
    %c0_i32 = arith.constant 0 : i32
    %c0_i32_0 = arith.constant 0 : i32
    return %arg0, %c0_i32 : i32, i32
  }
  func.func @transform_2(%arg0: i32) -> (i32, i32) {
    %c0_i32 = arith.constant 0 : i32
    %c0_i32_0 = arith.constant 0 : i32
    %c0_i32_1 = arith.constant 0 : i32
    return %c0_i32, %c0_i32_0 : i32, i32
  }
  func.func @transform_3(%arg0: i32) -> (i32, i32) {
    %c0_i32 = arith.constant 0 : i32
    %c0_i32_0 = arith.constant 0 : i32
    %c0_i32_1 = arith.constant 0 : i32
    return %c0_i32, %c0_i32_0 : i32, i32
  }
  func.func @transform_4(%arg0: i32) -> (i32, i32) {
    %c0_i32 = arith.constant 0 : i32
    %c0_i32_0 = arith.constant 0 : i32
    %c0_i32_1 = arith.constant 0 : i32
    return %c0_i32, %c0_i32_0 : i32, i32
  }
  func.func @transform_5(%arg0: i32) -> (i32, i32) {
    %c0_i32 = arith.constant 0 : i32
    %c0_i32_0 = arith.constant 0 : i32
    %c0_i32_1 = arith.constant 0 : i32
    return %c0_i32, %c0_i32_0 : i32, i32
  }
  func.func @transform_6(%arg0: i32) -> (i32, i32) {
    %c0_i32 = arith.constant 0 : i32
    %c0_i32_0 = arith.constant 0 : i32
    %c0_i32_1 = arith.constant 0 : i32
    return %c0_i32, %c0_i32_0 : i32, i32
  }
  func.func @transform_7(%arg0: i32) -> (i32, i32) {
    %c0_i32 = arith.constant 0 : i32
    %c0_i32_0 = arith.constant 0 : i32
    %c0_i32_1 = arith.constant 0 : i32
    return %c0_i32, %c0_i32_0 : i32, i32
  }
  func.func @transform_8(%arg0: i32) -> (i32, i32) {
    %c0_i32 = arith.constant 0 : i32
    %c0_i32_0 = arith.constant 0 : i32
    return %arg0, %c0_i32 : i32, i32
  }
}

</mosaic_0001>

<llo_original>
// kernel: tpu_custom_call.1
$region0: #{tpu_custom_call.1}
  #allocation0 [shape = 'u32[]', space=smem, size = 0x4, offset = 0x4, fixed_abs, tag = 'smem constant byte address 0x4 - core index']
  #allocation1 [shape = 'u32[144,128]{1,0:T(1,128)}', space=vmem, size = 0x12000, scoped, tag = 'internal scratch']
  #allocation2 [shape = 'f32[1,1]{1,0:T(1,128)S(1)}', space=vmem, size = 0x200, scoped, tag = 'scoped memory for tpu_custom_call.1']
  %s0 = inlined_call_operand.vmem [shape: f32[8,48], index: 0, kind: input, shape index: {}]
  %s1 = inlined_call_operand.vmem [shape: f32[8,6], index: 1, kind: input, shape index: {}]
  %s2 = inlined_call_operand.vmem [shape: bf16[48,128], index: 2, kind: input, shape index: {}]
  %s3 = inlined_call_operand.vmem [shape: f32[1,128], index: 3, kind: input, shape index: {}]
  %s4 = inlined_call_operand.vmem [shape: bf16[128,64], index: 4, kind: input, shape index: {}]
  %s5 = inlined_call_operand.vmem [shape: f32[1,64], index: 5, kind: input, shape index: {}]
  %s6 = inlined_call_operand.vmem [shape: f32[1,64], index: 6, kind: input, shape index: {}]
  %s7 = inlined_call_operand.<no memory space> [shape: f32[1,1], index: 7, kind: input, shape index: {}]
  %s8 = inlined_call_operand.vmem [shape: f32[8,1], index: 8, kind: output, shape index: {}]
  %s9 = sld [smem:[#allocation0]]
  $region42: #{tpu_custom_call.1} parent=0
    _
  %s11 = ssub.s32 1, %s9
  %s12 = scalar_select 0, %s11, %s9
  %v13 = vstv %s7
  %14 = vst [vmem:[#allocation2] sm:$0x1] %v13
  // Predicated region
  $region2: #{tpu_custom_call.1} parent=0 // pred_check
    _
  $region3: #{tpu_custom_call.1} parent=0 // pred_check_branch
    %16 = sbr.rel (0) target = $region5
  $region4: #{tpu_custom_call.1} parent=0 // pred_region
    _
  $region5: #{tpu_custom_call.1} parent=0 // pred_fallthru
    _
  // Predicated region
  $region6: #{tpu_custom_call.1} parent=0 // pred_check
    _
  $region7: #{tpu_custom_call.1} parent=0 // pred_check_branch
    %18 = sbr.rel (0) target = $region9
  $region8: #{tpu_custom_call.1} parent=0 // pred_region
    _
  $region9: #{tpu_custom_call.1} parent=0 // pred_fallthru
    _
  // Predicated region
  $region10: #{tpu_custom_call.1} parent=0 // pred_check
    _
  $region11: #{tpu_custom_call.1} parent=0 // pred_check_branch
    %20 = sbr.rel (0) target = $region13
  $region12: #{tpu_custom_call.1} parent=0 // pred_region
    _
  $region13: #{tpu_custom_call.1} parent=0 // pred_fallthru
    _
  // Predicated region
  $region14: #{tpu_custom_call.1} parent=0 // pred_check
    _
  $region15: #{tpu_custom_call.1} parent=0 // pred_check_branch
    %22 = sbr.rel (0) target = $region17
  $region16: #{tpu_custom_call.1} parent=0 // pred_region
    _
  $region17: #{tpu_custom_call.1} parent=0 // pred_fallthru
    _
  // Predicated region
  $region18: #{tpu_custom_call.1} parent=0 // pred_check
    _
  $region19: #{tpu_custom_call.1} parent=0 // pred_check_branch
    %24 = sbr.rel (0) target = $region21
  $region20: #{tpu_custom_call.1} parent=0 // pred_region
    _
  $region21: #{tpu_custom_call.1} parent=0 // pred_fallthru
    _
  // Predicated region
  $region22: #{tpu_custom_call.1} parent=0 // pred_check
    _
  $region23: #{tpu_custom_call.1} parent=0 // pred_check_branch
    %26 = sbr.rel (0) target = $region25
  $region24: #{tpu_custom_call.1} parent=0 // pred_region
    _
  $region25: #{tpu_custom_call.1} parent=0 // pred_fallthru
    _
  // Predicated region
  $region26: #{tpu_custom_call.1} parent=0 // pred_check
    _
  $region27: #{tpu_custom_call.1} parent=0 // pred_check_branch
    %28 = sbr.rel (0) target = $region29
  $region28: #{tpu_custom_call.1} parent=0 // pred_region
    _
  $region29: #{tpu_custom_call.1} parent=0 // pred_fallthru
    _
  // Predicated region
  $region30: #{tpu_custom_call.1} parent=0 // pred_check
    _
  $region31: #{tpu_custom_call.1} parent=0 // pred_check_branch
    %30 = sbr.rel (0) target = $region33
  $region32: #{tpu_custom_call.1} parent=0 // pred_region
    _
  $region33: #{tpu_custom_call.1} parent=0 // pred_fallthru
    _
  %v32 = vld [vmem:[%s0] sm:$0xff]
  %34 = vrot.lane.b32.xlu0 %v32, 120
  %v35 = vpop.permute.xlu0 %34
  %v37 = vadd.f32 %v32, %v35
  %38 = vrot.lane.b32.xlu0 %v32, 112
  %v39 = vpop.permute.xlu0 %38
  %v41 = vadd.f32 %v37, %v39
  %42 = vrot.lane.b32.xlu0 %v32, 104
  %v43 = vpop.permute.xlu0 %42
  %v45 = vadd.f32 %v41, %v43
  %46 = vrot.lane.b32.xlu0 %v32, 96
  %v47 = vpop.permute.xlu0 %46
  %v49 = vadd.f32 %v45, %v47
  %50 = vrot.lane.b32.xlu0 %v32, 88
  %v51 = vpop.permute.xlu0 %50
  %v53 = vadd.f32 %v49, %v51
  %v54 = vmul.f32 %v32, %v32
  %vm55 = vcmask 392192
  %v56 = vsel %vm55, %v54, 0.0
  %57 = vadd.xlane.f32.xlu0 %v56
  %v58 = vpop.xlane.xlu0 %57
  %v59 = vmul.f32 %v53, %v53
  %vm60 = vcmask 64512
  %v61 = vsel %vm60, %v59, 0.0
  %62 = vadd.xlane.f32.xlu0 %v61
  %v63 = vpop.xlane.xlu0 %62
  %v64 = vsub.f32 %v63, %v58
  %v65 = vmul.f32 %v64, 0.5
  %v66 = vld [vmem:[%s1] sm:$0xff]
  %vm67 = vcmask 48128
  %v68 = vsel %vm67, %v66, 0.0
  %69 = vadd.xlane.f32.xlu0 %v68
  %v70 = vpop.xlane.xlu0 %69
  %v71 = vpack.c.bf16 %v32, %v32
  %v72 = vld [vmem:[%s2] sm:$0xf]
  %v73 = vld [vmem:[%s2 + $0x4] sm:$0xf]
  %v74 = vld [vmem:[%s2 + $0x8] sm:$0xf]
  %v75 = vld [vmem:[%s2 + $0xc] sm:$0xf]
  %v76 = vld [vmem:[%s2 + $0x10] sm:$0xf]
  %v77 = vld [vmem:[%s2 + $0x14] sm:$0xf]
  %v78 = vld [vmem:[%s3] sm:$0x1]
  %v80 = vlaneseq
  %v81 = vshrl.u32 %v80, 7
  %v82 = vsub.s32 0, %v81
  %v83 = vrot.slane %v78, %v82
  %v91 = vunpack.c.l.b16 %v72
  %v92 = vunpack.c.l.b16 %v73
  %v93 = vunpack.c.l.b16 %v74
  %v94 = vunpack.c.l.b16 %v75
  %v95 = vunpack.c.l.b16 %v76
  %v96 = vunpack.c.l.b16 %v77
  %v97 = vpack.c.b16 %v92, %v91
  %v98 = vpack.c.b16 %v94, %v93
  %v99 = vpack.c.b16 %v96, %v95
  %v104 = vsel %vm55, %v71, 0
  %106 = vmatprep.subr.bf16.mxu0 0
  %107 = vmatpush1.bf16.msra.mxu0 %v97
  %108 = vmatprep.subr.bf16.mxu0 0
  %109 = vmatpush1.bf16.msra.mxu0 %v98
  %110 = vmatprep.subr.bf16.mxu0 0
  %111 = vmatpush1.bf16.msra.mxu0 %v99
  %112 = vmatprep.subr.bf16.mxu0 0
  %113 = vmatpush1.bf16.msra.mxu0 0
  %114 = vmatprep.subr.bf16.mxu0 0
  %115 = vmatpush1.bf16.msra.mxu0 0
  %116 = vmatprep.subr.bf16.mxu0 0
  %117 = vmatpush1.bf16.msra.mxu0 0
  %118 = vmatprep.subr.bf16.mxu0 0
  %119 = vmatpush1.bf16.msra.mxu0 0
  %120 = vmatprep.subr.bf16.mxu0 0
  %121 = vmatpush1.bf16.msra.mxu0 0
  %122 = vmatprep.subr.bf16.mxu0 0
  %123 = vmatpush1.bf16.msra.mxu0 0
  %124 = vmatprep.subr.bf16.mxu0 0
  %125 = vmatpush1.bf16.msra.mxu0 0
  %126 = vmatprep.subr.bf16.mxu0 0
  %127 = vmatpush1.bf16.msra.mxu0 0
  %128 = vmatprep.subr.bf16.mxu0 0
  %129 = vmatpush1.bf16.msra.mxu0 0
  %130 = vmatprep.subr.bf16.mxu0 0
  %131 = vmatpush1.bf16.msra.mxu0 0
  %132 = vmatprep.subr.bf16.mxu0 0
  %133 = vmatpush1.bf16.msra.mxu0 0
  %134 = vmatprep.subr.bf16.mxu0 0
  %135 = vmatpush1.bf16.msra.mxu0 0
  %136 = vmatprep.subr.bf16.mxu0 0
  %137 = vmatpush1.bf16.msra.mxu0 0
  %138 = vmatprep.mubr.bf16.mxu0 0
  %139 = vmatmul.mubr.bf16.gmra.mrb[0].mxu0 %v104
  %v140 = vpop.f32.mrb[0].mxu0
  %v141 = vadd.f32 %v83, %v140
  %v142 = vpop.f32.mrb[0].mxu0
  %v143 = vpop.f32.mrb[0].mxu0
  %v144 = vpop.f32.mrb[0].mxu0
  %145 = vdwg.mxu0
  %v146 = vmax.f32 %v141, 0.0
  %147 = vadd.xlane.f32.xlu0 %v146
  %v148 = vpop.xlane.xlu0 %147
  %v149 = vrcp.pop 128.0
  %v150 = vmul.f32 %v148, %v149
  %v151 = vsub.f32 %v146, %v150
  %v152 = vmul.f32 %v151, %v151
  %153 = vadd.xlane.f32.xlu0 %v152
  %v154 = vpop.xlane.xlu0 %153
  %v155 = vmul.f32 %v154, %v149
  %v156 = vadd.f32 %v155, 1e-08
  %v157 = vrsqrt.pop %v156
  %v158 = vmul.f32 %v151, %v157
  %v159 = vpack.c.bf16 %v158, %v158
  %v160 = vld [vmem:[%s4] sm:$0xf]
  %v161 = vld [vmem:[%s4 + $0x4] sm:$0xf]
  %v162 = vld [vmem:[%s4 + $0x8] sm:$0xf]
  %v163 = vld [vmem:[%s4 + $0xc] sm:$0xf]
  %v164 = vld [vmem:[%s4 + $0x10] sm:$0xf]
  %v165 = vld [vmem:[%s4 + $0x14] sm:$0xf]
  %v166 = vld [vmem:[%s4 + $0x18] sm:$0xf]
  %v167 = vld [vmem:[%s4 + $0x1c] sm:$0xf]
  %v168 = vld [vmem:[%s4 + $0x20] sm:$0xf]
  %v169 = vld [vmem:[%s4 + $0x24] sm:$0xf]
  %v170 = vld [vmem:[%s4 + $0x28] sm:$0xf]
  %v171 = vld [vmem:[%s4 + $0x2c] sm:$0xf]
  %v172 = vld [vmem:[%s4 + $0x30] sm:$0xf]
  %v173 = vld [vmem:[%s4 + $0x34] sm:$0xf]
  %v174 = vld [vmem:[%s4 + $0x38] sm:$0xf]
  %v175 = vld [vmem:[%s4 + $0x3c] sm:$0xf]
  %v176 = vld [vmem:[%s5] sm:$0x1]
  %v178 = vlaneseq
  %v179 = vshrl.u32 %v178, 7
  %v180 = vsub.s32 0, %v179
  %v181 = vrot.slane %v176, %v180
  %v199 = vunpack.c.l.b16 %v160
  %v200 = vunpack.c.l.b16 %v161
  %v201 = vunpack.c.l.b16 %v162
  %v202 = vunpack.c.l.b16 %v163
  %v203 = vunpack.c.l.b16 %v164
  %v204 = vunpack.c.l.b16 %v165
  %v205 = vunpack.c.l.b16 %v166
  %v206 = vunpack.c.l.b16 %v167
  %v207 = vunpack.c.l.b16 %v168
  %v208 = vunpack.c.l.b16 %v169
  %v209 = vunpack.c.l.b16 %v170
  %v210 = vunpack.c.l.b16 %v171
  %v211 = vunpack.c.l.b16 %v172
  %v212 = vunpack.c.l.b16 %v173
  %v213 = vunpack.c.l.b16 %v174
  %v214 = vunpack.c.l.b16 %v175
  %v215 = vpack.c.b16 %v200, %v199
  %v216 = vpack.c.b16 %v202, %v201
  %v217 = vpack.c.b16 %v204, %v203
  %v218 = vpack.c.b16 %v206, %v205
  %v219 = vpack.c.b16 %v208, %v207
  %v220 = vpack.c.b16 %v210, %v209
  %v221 = vpack.c.b16 %v212, %v211
  %v222 = vpack.c.b16 %v214, %v213
  %231 = vmatprep.subr.bf16.mxu0 0
  %232 = vmatpush1.bf16.msra.mxu0 %v215
  %233 = vmatprep.subr.bf16.mxu0 0
  %234 = vmatpush1.bf16.msra.mxu0 %v216
  %235 = vmatprep.subr.bf16.mxu0 0
  %236 = vmatpush1.bf16.msra.mxu0 %v217
  %237 = vmatprep.subr.bf16.mxu0 0
  %238 = vmatpush1.bf16.msra.mxu0 %v218
  %239 = vmatprep.subr.bf16.mxu0 0
  %240 = vmatpush1.bf16.msra.mxu0 %v219
  %241 = vmatprep.subr.bf16.mxu0 0
  %242 = vmatpush1.bf16.msra.mxu0 %v220
  %243 = vmatprep.subr.bf16.mxu0 0
  %244 = vmatpush1.bf16.msra.mxu0 %v221
  %245 = vmatprep.subr.bf16.mxu0 0
  %246 = vmatpush1.bf16.msra.mxu0 %v222
  %247 = vmatprep.subr.bf16.mxu0 0
  %248 = vmatpush1.bf16.msra.mxu0 0
  %249 = vmatprep.subr.bf16.mxu0 0
  %250 = vmatpush1.bf16.msra.mxu0 0
  %251 = vmatprep.subr.bf16.mxu0 0
  %252 = vmatpush1.bf16.msra.mxu0 0
  %253 = vmatprep.subr.bf16.mxu0 0
  %254 = vmatpush1.bf16.msra.mxu0 0
  %255 = vmatprep.subr.bf16.mxu0 0
  %256 = vmatpush1.bf16.msra.mxu0 0
  %257 = vmatprep.subr.bf16.mxu0 0
  %258 = vmatpush1.bf16.msra.mxu0 0
  %259 = vmatprep.subr.bf16.mxu0 0
  %260 = vmatpush1.bf16.msra.mxu0 0
  %261 = vmatprep.subr.bf16.mxu0 0
  %262 = vmatpush1.bf16.msra.mxu0 0
  %263 = vmatprep.mubr.bf16.mxu0 0
  %264 = vmatmul.mubr.bf16.gmra.mrb[0].mxu0 %v159
  %v265 = vpop.f32.mrb[0].mxu0
  %v266 = vadd.f32 %v181, %v265
  %v267 = vpop.f32.mrb[0].mxu0
  %v268 = vpop.f32.mrb[0].mxu0
  %v269 = vpop.f32.mrb[0].mxu0
  %270 = vdwg.mxu0
  %v271 = vmax.f32 %v266, 0.0
  %vm272 = vcmask 523264
  %v273 = vsel %vm272, %v271, 0.0
  %274 = vadd.xlane.f32.xlu0 %v273
  %v275 = vpop.xlane.xlu0 %274
  %v276 = vrcp.pop 64.0
  %v277 = vmul.f32 %v275, %v276
  %v278 = vsub.f32 %v271, %v277
  %v279 = vmul.f32 %v278, %v278
  %v280 = vsel %vm272, %v279, 0.0
  %281 = vadd.xlane.f32.xlu0 %v280
  %v282 = vpop.xlane.xlu0 %281
  %v283 = vmul.f32 %v282, %v276
  %v284 = vadd.f32 %v283, 1e-08
  %v285 = vrsqrt.pop %v284
  %v286 = vmul.f32 %v278, %v285
  %v287 = vld [vmem:[%s6] sm:$0x1]
  %v289 = vlaneseq
  %v290 = vshrl.u32 %v289, 7
  %v291 = vsub.s32 0, %v290
  %v292 = vrot.slane %v287, %v291
  %v294 = vmul.f32 %v286, %v292
  %v295 = vsel %vm272, %v294, 0.0
  %296 = vadd.xlane.f32.xlu0 %v295
  %v297 = vpop.xlane.xlu0 %296
  %v298 = vld [vmem:[#allocation2] sm:$0x1]
  %v300 = vlaneseq
  %v301 = vshrl.u32 %v300, 7
  %v302 = vsub.s32 0, %v301
  %v303 = vrot.slane %v298, %v302
  %v305 = vadd.f32 %v297, %v303
  %v306 = vadd.f32 %v305, %v65
  %v307 = vadd.f32 %v306, %v70
  %v308 = vsub.f32 0.0, %v307
  %v309 = vmul.f32 %v308, 1.442695
  %v310 = vpow.pop %v309
  %v311 = vadd.f32 %v310, 1.0
  %v312 = vrcp.pop %v311
  %v313 = vmul.f32 1.0, %v312
  %vm314 = vcmask 7168
  %315 = vst.msk [vmem:[%s8] sm:$0xff] %vm314, %v313
  // Predicated region
  $region34: #{tpu_custom_call.1} parent=0 // pred_check
    _
  $region35: #{tpu_custom_call.1} parent=0 // pred_check_branch
    %317 = sbr.rel (0) target = $region37
  $region36: #{tpu_custom_call.1} parent=0 // pred_region
    _
  $region37: #{tpu_custom_call.1} parent=0 // pred_fallthru
    _
  // Predicated region
  $region38: #{tpu_custom_call.1} parent=0 // pred_check
    _
  $region39: #{tpu_custom_call.1} parent=0 // pred_check_branch
    %319 = sbr.rel (0) target = $region41
  $region40: #{tpu_custom_call.1} parent=0 // pred_region
    _
  $region41: #{tpu_custom_call.1} parent=0 // pred_fallthru
    _

</llo_original>
